<compile_context>
chip_gen: v6e
topology: v6e:2x2x1
jax: 0.10.0
libtpu: 0.0.40
codegen_flags: <defaults>
</compile_context>

<pallas_src>
import jax
import jax.numpy as jnp
from jax.experimental import pallas as pl
from jax.experimental.pallas import tpu as pltpu

_LANE = 128
_MAX_TILE_ROWS = 4096  # (4096, 128) f32 = 2 MiB per VMEM buffer.

# Abramowitz & Stegun 7.1.26 erf approximation (max abs error 1.5e-7).
_P = 0.3275911
_A1 = 0.254829592
_A2 = -0.284496736
_A3 = 1.421413741
_A4 = -1.453152027
_A5 = 1.061405429
_INV_SQRT2 = 0.7071067811865476


def _round_up(x: int, m: int) -> int:
    return -(-x // m) * m


def _gelu_kernel(x_ref, o_ref):
    x = x_ref[...]
    ax = jnp.abs(x)
    a = ax * _INV_SQRT2                      # |x| / sqrt(2)
    d = 1.0 + _P * a
    # EUP approximate reciprocal + one Newton step: moves the divide off the VALU
    # while keeping ~full f32 precision (needed for the 1e-5 accuracy check).
    r = pl.reciprocal(d, approx=True)
    t = r * (2.0 - d * r)
    poly = t * (_A1 + t * (_A2 + t * (_A3 + t * (_A4 + t * _A5))))
    erf_abs = 1.0 - poly * jnp.exp(-(a * a))  # erf(|x|/sqrt(2)) >= 0
    # GELU(x) = 0.5*x*(1 + sign(x)*erf_abs) = 0.5*(x + |x|*erf_abs): no select.
    o_ref[...] = (0.5 * (x + ax * erf_abs)).astype(o_ref.dtype)


def complex_gelu(z, *, max_tile_rows: int = _MAX_TILE_ROWS):
    """GELU(z.real) + 1j * GELU(z.imag), computed in a single Pallas pass."""
    if not jnp.issubdtype(z.dtype, jnp.complexfloating):
        raise ValueError(f"complex_gelu expects a complex input, got {z.dtype}")
    if z.dtype != jnp.complex64:
        # TODO(synk): complex128 would silently lose precision in f32; reject it.
        raise NotImplementedError(f"complex_gelu supports complex64 only, got {z.dtype}")

    shape = z.shape
    n = z.size
    total = 2 * n

    # Single fused pass: complex64 -> interleaved f32 stream (*shape, 2).
    interleaved = jnp.stack([jnp.real(z), jnp.imag(z)], axis=-1)
    flat = interleaved.reshape(-1)

    rows = pl.cdiv(total, _LANE)
    if rows * _LANE != total:
        # Rare ragged case only: pad to the next 128-lane row (GELU(0)=0 is inert).
        flat = jnp.pad(flat, (0, rows * _LANE - total))
    x2d = flat.reshape(rows, _LANE)

    # Aim for >= 2 grid steps (v7x: shard the "parallel" axis across both TCs);
    # tile rows stay a multiple of 8 (sublane alignment).  The last block may be
    # ragged in rows — Pallas masks its writeback.
    tile_rows = max(8, min(max_tile_rows, _round_up(pl.cdiv(rows, 2), 8)))
    num_tiles = pl.cdiv(rows, tile_rows)

    out2d = pl.pallas_call(
        _gelu_kernel,
        out_shape=jax.ShapeDtypeStruct((rows, _LANE), jnp.float32),
        grid=(num_tiles,),
        in_specs=[pl.BlockSpec((tile_rows, _LANE), lambda i: (i, 0))],
        out_specs=pl.BlockSpec((tile_rows, _LANE), lambda i: (i, 0)),
        input_output_aliases={0: 0},  # kernel fully overwrites every output block
        compiler_params=pltpu.CompilerParams(dimension_semantics=("parallel",)),
        cost_estimate=pl.CostEstimate(
            flops=25 * rows * _LANE,
            transcendentals=2 * rows * _LANE,
            bytes_accessed=2 * rows * _LANE * 4,
        ),
    )(x2d)

    # Single fused pass: interleaved f32 -> complex64.
    out = out2d.reshape(-1)[:total].reshape(*shape, 2)
    return jax.lax.complex(out[..., 0], out[..., 1])


def reference_complex_gelu(z):
    # Pure-JAX reference matching torch.nn.GELU() (exact, erf-based) on re/im.
    return jax.lax.complex(jax.nn.gelu(jnp.real(z), approximate=False),
                           jax.nn.gelu(jnp.imag(z), approximate=False))


if __name__ == "__main__":
    key = jax.random.PRNGKey(0)
    fn = jax.jit(complex_gelu)

    # Main small shape (2, 4, 16, 16); the odd shape exercises the ragged/pad path.
    for shape in [(2, 4, 16, 16), (3, 5, 7, 11)]:
        key, kr, ki = jax.random.split(key, 3)
        zr = jax.random.normal(kr, shape, dtype=jnp.float32)
        zi = jax.random.normal(ki, shape, dtype=jnp.float32)
        z = jax.lax.complex(zr, zi)

        out = jax.block_until_ready(fn(z))
        ref = reference_complex_gelu(z)

        assert out.shape == shape and out.dtype == jnp.complex64
        err = float(jnp.max(jnp.abs(out - ref)))
        assert err < 1e-5, f"shape={shape}: max abs err = {err}"

    print("KERNEL_OK")
</pallas_src>

<mosaic_0001>
module attributes {stable_mosaic.version = 11 : i64} {
  func.func @_gelu_kernel(%arg0: i32, %arg1: memref<16x128xf32, #tpu.memory_space<vmem>>, %arg2: memref<16x128xf32, #tpu.memory_space<vmem>>) attributes {dimension_semantics = [#tpu.dimension_semantics<parallel>], iteration_bounds = array<i64: 2>, scalar_prefetch = 0 : i64, scratch_operands = 0 : i64, tpu.core_type = #tpu.core_type<tc>, window_params = [{transform_indices = @transform_0, window_bounds = array<i64: 16, 128>}, {transform_indices = @transform_1, window_bounds = array<i64: 16, 128>}]} {
    %c0 = arith.constant 0 : index
    %c0_0 = arith.constant 0 : index
    %0 = vector.load %arg1[%c0, %c0_0] : memref<16x128xf32, #tpu.memory_space<vmem>>, vector<16x128xf32>
    %1 = math.absf %0 : vector<16x128xf32>
    %cst = arith.constant 0.707106769 : f32
    %2 = vector.broadcast %cst : f32 to vector<16x128xf32>
    %3 = arith.mulf %1, %2 : vector<16x128xf32>
    %cst_1 = arith.constant 0.327591091 : f32
    %4 = vector.broadcast %cst_1 : f32 to vector<16x128xf32>
    %5 = arith.mulf %4, %3 : vector<16x128xf32>
    %cst_2 = arith.constant 1.000000e+00 : f32
    %6 = vector.broadcast %cst_2 : f32 to vector<16x128xf32>
    %7 = arith.addf %6, %5 : vector<16x128xf32>
    %8 = tpu.reciprocal %7 {approx = true} : vector<16x128xf32> -> vector<16x128xf32>
    %9 = arith.mulf %7, %8 : vector<16x128xf32>
    %cst_3 = arith.constant 2.000000e+00 : f32
    %10 = vector.broadcast %cst_3 : f32 to vector<16x128xf32>
    %11 = arith.subf %10, %9 : vector<16x128xf32>
    %12 = arith.mulf %8, %11 : vector<16x128xf32>
    %cst_4 = arith.constant 1.06140542 : f32
    %13 = vector.broadcast %cst_4 : f32 to vector<16x128xf32>
    %14 = arith.mulf %12, %13 : vector<16x128xf32>
    %cst_5 = arith.constant -1.45315206 : f32
    %15 = vector.broadcast %cst_5 : f32 to vector<16x128xf32>
    %16 = arith.addf %15, %14 : vector<16x128xf32>
    %17 = arith.mulf %12, %16 : vector<16x128xf32>
    %cst_6 = arith.constant 1.42141378 : f32
    %18 = vector.broadcast %cst_6 : f32 to vector<16x128xf32>
    %19 = arith.addf %18, %17 : vector<16x128xf32>
    %20 = arith.mulf %12, %19 : vector<16x128xf32>
    %cst_7 = arith.constant -0.284496725 : f32
    %21 = vector.broadcast %cst_7 : f32 to vector<16x128xf32>
    %22 = arith.addf %21, %20 : vector<16x128xf32>
    %23 = arith.mulf %12, %22 : vector<16x128xf32>
    %cst_8 = arith.constant 0.254829586 : f32
    %24 = vector.broadcast %cst_8 : f32 to vector<16x128xf32>
    %25 = arith.addf %24, %23 : vector<16x128xf32>
    %26 = arith.mulf %12, %25 : vector<16x128xf32>
    %27 = arith.mulf %3, %3 : vector<16x128xf32>
    %cst_9 = arith.constant 0.000000e+00 : f32
    %28 = vector.broadcast %cst_9 : f32 to vector<16x128xf32>
    %29 = arith.subf %28, %27 : vector<16x128xf32>
    %30 = math.exp %29 : vector<16x128xf32>
    %31 = arith.mulf %26, %30 : vector<16x128xf32>
    %cst_10 = arith.constant 1.000000e+00 : f32
    %32 = vector.broadcast %cst_10 : f32 to vector<16x128xf32>
    %33 = arith.subf %32, %31 : vector<16x128xf32>
    %34 = arith.mulf %1, %33 : vector<16x128xf32>
    %35 = arith.addf %0, %34 : vector<16x128xf32>
    %cst_11 = arith.constant 5.000000e-01 : f32
    %36 = vector.broadcast %cst_11 : f32 to vector<16x128xf32>
    %37 = arith.mulf %36, %35 : vector<16x128xf32>
    %c0_12 = arith.constant 0 : index
    %c0_13 = arith.constant 0 : index
    %38 = vector.load %arg2[%c0_12, %c0_13] : memref<16x128xf32, #tpu.memory_space<vmem>>, vector<16x128xf32>
    tpu.vector_store %arg2[%c0_12, %c0_13], %37 {strides = array<i32>} : memref<16x128xf32, #tpu.memory_space<vmem>>, vector<16x128xf32>,
    return
  }
  func.func @transform_0(%arg0: i32) -> (i32, i32) {
    %c0_i32 = arith.constant 0 : i32
    %c0_i32_0 = arith.constant 0 : i32
    return %arg0, %c0_i32 : i32, i32
  }
  func.func @transform_1(%arg0: i32) -> (i32, i32) {
    %c0_i32 = arith.constant 0 : i32
    %c0_i32_0 = arith.constant 0 : i32
    return %arg0, %c0_i32 : i32, i32
  }
}

</mosaic_0001>

<llo_original>
// kernel: custom-call
$region0: #{custom-call}
  %s0 = inlined_call_operand.hbm [shape: c64[2,4,16,16], index: 0, kind: input, shape index: {}]
  %s1 = inlined_call_operand.vmem [shape: f32[2,4,16,16], index: 1, kind: output, shape index: {}]
  $region1: #{custom-call} parent=0
    #allocation0 [shape = 's32[1]{0}', space=sflag, size = 0x4, scoped, tag = 'scoped memory for custom-call']
    %2 = vsyncpa [#allocation0], 0
    %s3 = sshll.u32 %s1, 4
    %s4 = int_to_ptr.vmem [resolvable:$true] %s3
    %6 = dma.hbm_to_vmem [thread:$0]  %s0, 2048, %s4, [#allocation0]
    %7 = dma.done [#allocation0], 2048
    %8 = vsyncpa [#allocation0], 1

// kernel: custom-call.1
$region0: #{custom-call.1}
  %s0 = inlined_call_operand.hbm [shape: c64[2,4,16,16], index: 0, kind: input, shape index: {}]
  %s1 = inlined_call_operand.vmem [shape: f32[2,4,16,16], index: 1, kind: output, shape index: {}]
  %s2 = scalar_lea.hbm %s0, 2048
  $region1: #{custom-call.1} parent=0
    #allocation0 [shape = 's32[1]{0}', space=sflag, size = 0x4, scoped, tag = 'scoped memory for custom-call.1']
    %3 = vsyncpa [#allocation0], 0
    %s4 = sshll.u32 %s1, 4
    %s5 = int_to_ptr.vmem [resolvable:$true] %s4
    %7 = dma.hbm_to_vmem [thread:$0]  %s2, 2048, %s5, [#allocation0]
    %8 = dma.done [#allocation0], 2048
    %9 = vsyncpa [#allocation0], 1

// kernel: complex_gelu.1
$region0: #{complex_gelu.1}
  #allocation0 [shape = 'u32[]', space=smem, size = 0x4, offset = 0x4, fixed_abs, tag = 'smem constant byte address 0x4 - core index']
  #allocation1 [shape = 'u32[144,128]{1,0:T(1,128)}', space=vmem, size = 0x12000, scoped, tag = 'internal scratch']
  %s0 = inlined_call_operand.vmem [shape: f32[32,128], index: 0, kind: input, shape index: {}, may-alias: {0,1}]
  %s1 = inlined_call_operand.vmem [shape: f32[32,128], index: 1, kind: output, shape index: {}, may-alias: {0,1}]
  %s2 = sld [smem:[#allocation0]]
  $region37: #{complex_gelu.1} parent=0
    _
  %s4 = ssub.s32 1, %s2
  %s5 = scalar_select 0, %s4, %s2
  loop: start=0, step=1, limit=4
  $region2: #{complex_gelu.1} parent=0 // loop_pre_header
    _
  $region3: #{complex_gelu.1} parent=0 // loop_header
    %s7 = sphi 0, %s11
    %p8 = scmp.ge.s32.totalorder %s7, 4
    %s17 = sphi 0, %s19
    %s20 = sphi 0, %s17
    %s21 = sphi 0, %s20
    %s37 = sphi 0, %s21
    %s43 = sphi 0, %s45
    %s46 = sphi 0, %s43
    %s47 = sphi 0, %s46
    %s63 = sphi 0, %s47
  $region4: #{complex_gelu.1} parent=0 // loop_header_branch
    %10 = sbr.rel (%p8) target = $region8
  $region5: #{complex_gelu.1} parent=0 // loop_body
    %s12 = ssub.s32 %s7, 1
    %s13 = ssub.s32 %s7, 2
    %s14 = sadd.s32 %s7, 1
    %s15 = ssub.s32 %s7, %s14
    %p16 = scmp.eq.s32.totalorder %s15, 0
    %s18 = sadd.s32 %s17, 1
    %s19 = scalar_select %p16, %s17, %s18
    %p22 = pneg %p16
    %p23 = scmp.eq.s32.totalorder %s7, 1
    %p24 = por %p22, %p23
    %p25 = scmp.ne.s32.totalorder %s17, %s20
    %p26 = scmp.eq.s32.totalorder %s7, 0
    %p27 = por %p25, %p26
    %p28 = scmp.ne.s32.totalorder %s17, %s20
    %p29 = scmp.eq.s32.totalorder %s12, 1
    %p30 = por %p28, %p29
    %p31 = scmp.ne.s32.totalorder %s20, %s21
    %p32 = scmp.eq.s32.totalorder %s12, 0
    %p33 = por %p31, %p32
    %p34 = scmp.ne.s32.totalorder %s20, %s21
    %p35 = scmp.eq.s32.totalorder %s13, 1
    %p36 = por %p34, %p35
    %p38 = scmp.ne.s32.totalorder %s21, %s37
    %p39 = scmp.eq.s32.totalorder %s13, 0
    %p40 = por %p38, %p39
    %s41 = ssub.s32 %s7, %s14
    %p42 = scmp.eq.s32.totalorder %s41, 0
    %s44 = sadd.s32 %s43, 1
    %s45 = scalar_select %p42, %s43, %s44
    %p48 = pneg %p42
    %p49 = scmp.eq.s32.totalorder %s7, 1
    %p50 = por %p48, %p49
    %p51 = scmp.ne.s32.totalorder %s43, %s46
    %p52 = scmp.eq.s32.totalorder %s7, 0
    %p53 = por %p51, %p52
    %p54 = scmp.ne.s32.totalorder %s43, %s46
    %p55 = scmp.eq.s32.totalorder %s12, 1
    %p56 = por %p54, %p55
    %p57 = scmp.ne.s32.totalorder %s46, %s47
    %p58 = scmp.eq.s32.totalorder %s12, 0
    %p59 = por %p57, %p58
    %p60 = scmp.ne.s32.totalorder %s46, %s47
    %p61 = scmp.eq.s32.totalorder %s13, 1
    %p62 = por %p60, %p61
    %p64 = scmp.ne.s32.totalorder %s47, %s63
    %p65 = scmp.eq.s32.totalorder %s13, 0
    %p66 = por %p64, %p65
    %p67 = scmp.le.s32.totalorder 1, %s7
    %p68 = scmp.lt.s32.totalorder %s7, 3
    %p69 = pnand %p67, %p68
    %p70 = pneg %p69
    // Predicated region
    $region9: #{complex_gelu.1} parent=5 // pred_check
      _
    $region10: #{complex_gelu.1} parent=5 // pred_check_branch
      %72 = sbr.rel (%p69) target = $region12
    $region11: #{complex_gelu.1} parent=5 // pred_region
      %s73 = ssub.s32 %s7, 1
    $region12: #{complex_gelu.1} parent=5 // pred_fallthru
      _
    %p74 = scmp.lt.s32.totalorder %s7, 2
    // Predicated region
    $region13: #{complex_gelu.1} parent=5 // pred_check
      %p75 = pneg %p74
    $region14: #{complex_gelu.1} parent=5 // pred_check_branch
      %77 = sbr.rel (%p75) target = $region16
    $region15: #{complex_gelu.1} parent=5 // pred_region
      // Predicated region
      $region17: #{complex_gelu.1} parent=15 // pred_check
        %p78 = pneg %p27
      $region18: #{complex_gelu.1} parent=15 // pred_check_branch
        %80 = sbr.rel (%p78) target = $region20
      $region19: #{complex_gelu.1} parent=15 // pred_region
        %s81 = smul.u32 2, %s7
        %p82 = scmp.lt.s32.totalorder %s81, 3
        %s83 = scalar_select %p82, %s81, 3
        %s84 = smul.addr %s83, 8
        %s85 = scalar_lea.vmem %s0, %s84
        %s86 = smul.u32 2, %s7
      $region20: #{complex_gelu.1} parent=15 // pred_fallthru
        _
    $region16: #{complex_gelu.1} parent=5 // pred_fallthru
      _
    %p87 = scmp.le.s32.totalorder 1, %s7
    %p88 = scmp.lt.s32.totalorder %s7, 3
    %p89 = pnand %p87, %p88
    %p90 = pneg %p89
    // Predicated region
    $region21: #{complex_gelu.1} parent=5 // pred_check
      _
    $region22: #{complex_gelu.1} parent=5 // pred_check_branch
      %92 = sbr.rel (%p89) target = $region24
    $region23: #{complex_gelu.1} parent=5 // pred_region
      %s93 = ssub.s32 %s7, 1
      %s94 = smul.u32 2, %s12
      %p95 = scmp.lt.s32.totalorder %s94, 3
      %s96 = scalar_select %p95, %s94, 3
      %s97 = smul.addr %s96, 8
      %s98 = scalar_lea.vmem %s0, %s97
      %p99 = pneg %p33
      %p100 = pneg %p30
      %p101 = pneg %p59
      %p102 = pneg %p56
      %s103 = smul.u32 2, %s12
      %p104 = scmp.lt.s32.totalorder %s103, 3
      %s105 = scalar_select %p104, %s103, 3
      %s106 = smul.addr %s105, 8
      %s107 = scalar_lea.vmem %s1, %s106
      %s108 = smul.u32 2, %s12
      %p109 = scmp.lt.s32.totalorder %s108, 3
      %s110 = scalar_select %p109, %s108, 3
      %s111 = smul.addr %s110, 8
      %s112 = scalar_lea.vmem %s0, %s111
      %s113 = smul.u32 2, %s12
      %s114 = smul.u32 2, %s12
      %p115 = scmp.lt.s32.totalorder %s114, 3
      %s116 = scalar_select %p115, %s114, 3
      %s117 = smul.addr %s116, 8
      %s118 = scalar_lea.vmem %s1, %s117
      %s119 = smul.u32 2, %s12
      %v120 = vld [vmem:[%s112] sm:$0xff]
      %v121 = vld [vmem:[%s112 + $0x8] sm:$0xff]
      %v122 = vand.u32 2147483647, %v120
      %v123 = vand.u32 2147483647, %v121
      %v124 = vmul.f32 %v122, 0.70710677
      %v125 = vmul.f32 %v123, 0.70710677
      %v126 = vmul.f32 %v124, 0.3275911
      %v127 = vmul.f32 %v125, 0.3275911
      %v128 = vadd.f32 %v126, 1.0
      %v129 = vadd.f32 %v127, 1.0
      %v130 = vrcp.pop %v128
      %v131 = vrcp.pop %v129
      %v132 = vmul.f32 %v128, %v130
      %v133 = vmul.f32 %v129, %v131
      %v134 = vsub.f32 2.0, %v132
      %v135 = vsub.f32 2.0, %v133
      %v136 = vmul.f32 %v130, %v134
      %v137 = vmul.f32 %v131, %v135
      %v138 = vmul.f32 %v136, 1.0614054
      %v139 = vmul.f32 %v137, 1.0614054
      %v140 = vadd.f32 %v138, -1.4531521
      %v141 = vadd.f32 %v139, -1.4531521
      %v142 = vmul.f32 %v136, %v140
      %v143 = vmul.f32 %v137, %v141
      %v144 = vadd.f32 %v142, 1.4214138
      %v145 = vadd.f32 %v143, 1.4214138
      %v146 = vmul.f32 %v136, %v144
      %v147 = vmul.f32 %v137, %v145
      %v148 = vadd.f32 %v146, -0.28449672
      %v149 = vadd.f32 %v147, -0.28449672
      %v150 = vmul.f32 %v136, %v148
      %v151 = vmul.f32 %v137, %v149
      %v152 = vadd.f32 %v150, 0.2548296
      %v153 = vadd.f32 %v151, 0.2548296
      %v154 = vmul.f32 %v136, %v152
      %v155 = vmul.f32 %v137, %v153
      %v156 = vmul.f32 %v124, %v124
      %v157 = vmul.f32 %v125, %v125
      %v158 = vsub.f32 0.0, %v156
      %v159 = vsub.f32 0.0, %v157
      %v160 = vmul.f32 %v158, 1.442695
      %v161 = vpow.pop %v160
      %v162 = vmul.f32 %v159, 1.442695
      %v163 = vpow.pop %v162
      %v164 = vmul.f32 %v154, %v161
      %v165 = vmul.f32 %v155, %v163
      %v166 = vsub.f32 1.0, %v164
      %v167 = vsub.f32 1.0, %v165
      %v168 = vmul.f32 %v122, %v166
      %v169 = vmul.f32 %v123, %v167
      %v170 = vadd.f32 %v120, %v168
      %v171 = vadd.f32 %v121, %v169
      %v172 = vmul.f32 %v170, 0.5
      %v173 = vmul.f32 %v171, 0.5
      %174 = vst [vmem:[%s118] sm:$0xff] %v172
      %175 = vst [vmem:[%s118 + $0x8] sm:$0xff] %v173
      %s176 = smul.u32 2, %s12
      %p177 = scmp.lt.s32.totalorder %s176, 3
      %s178 = scalar_select %p177, %s176, 3
      %s179 = smul.addr %s178, 8
      %s180 = scalar_lea.vmem %s1, %s179
      // Predicated region
      $region25: #{complex_gelu.1} parent=23 // pred_check
        %p181 = pneg %p56
      $region26: #{complex_gelu.1} parent=23 // pred_check_branch
        %183 = sbr.rel (%p181) target = $region28
      $region27: #{complex_gelu.1} parent=23 // pred_region
        %s184 = smul.u32 2, %s12
      $region28: #{complex_gelu.1} parent=23 // pred_fallthru
        _
    $region24: #{complex_gelu.1} parent=5 // pred_fallthru
      _
    %p185 = scmp.le.s32.totalorder 2, %s7
    // Predicated region
    $region29: #{complex_gelu.1} parent=5 // pred_check
      %p186 = pneg %p185
    $region30: #{complex_gelu.1} parent=5 // pred_check_branch
      %188 = sbr.rel (%p186) target = $region32
    $region31: #{complex_gelu.1} parent=5 // pred_region
      %s189 = ssub.s32 %s7, 2
      // Predicated region
      $region33: #{complex_gelu.1} parent=31 // pred_check
        %p190 = pneg %p62
      $region34: #{complex_gelu.1} parent=31 // pred_check_branch
        %192 = sbr.rel (%p190) target = $region36
      $region35: #{complex_gelu.1} parent=31 // pred_region
        %s193 = smul.u32 2, %s13
        %p194 = scmp.lt.s32.totalorder %s193, 3
        %s195 = scalar_select %p194, %s193, 3
        %s196 = smul.addr %s195, 8
        %s197 = scalar_lea.vmem %s1, %s196
      $region36: #{complex_gelu.1} parent=31 // pred_fallthru
        _
    $region32: #{complex_gelu.1} parent=5 // pred_fallthru
      _
  $region6: #{complex_gelu.1} parent=0 // loop_footer
    %s11 = sadd.s32 1, %s7
  $region7: #{complex_gelu.1} parent=0 // loop_footer_branch
    %6 = sbr.rel target = $region3
  $region8: #{complex_gelu.1} parent=0 // loop_exit
    _

// kernel: custom-call.2
$region0: #{custom-call.2}
  %s0 = inlined_call_operand.vmem [shape: f32[2,4,16,16], index: 0, kind: input, shape index: {}]
  %s1 = inlined_call_operand.vmem [shape: f32[2,4,16,16], index: 1, kind: input, shape index: {}]
  %s2 = inlined_call_operand.hbm [shape: c64[2,4,16,16], index: 2, kind: output, shape index: {}]
  %s3 = scalar_lea.hbm %s2, 2048
  $region1: #{custom-call.2} parent=0
    #allocation0 [shape = 's32[1]{0}', space=sflag, size = 0x4, scoped, tag = 'scoped memory for custom-call.2']
    %4 = vsyncpa [#allocation0], 0
    %s5 = sshll.u32 %s0, 4
    %s6 = int_to_ptr.vmem [resolvable:$true] %s5
    %8 = dma.vmem_to_hbm [thread:$0]  %s6, 2048, %s2, [#allocation0]
    %9 = dma.done [#allocation0], 2048
    %10 = vsyncpa [#allocation0], 1
  $region2: #{custom-call.2} parent=0
    #allocation1 [shape = 's32[1]{0}', space=sflag, size = 0x4, scoped, tag = 'scoped memory for custom-call.2']
    %11 = vsyncpa [#allocation1], 0
    %s12 = sshll.u32 %s1, 4
    %s13 = int_to_ptr.vmem [resolvable:$true] %s12
    %15 = dma.vmem_to_hbm [thread:$0]  %s13, 2048, %s3, [#allocation1]
    %16 = dma.done [#allocation1], 2048
    %17 = vsyncpa [#allocation1], 1

</llo_original>
